<compile_context>
chip_gen: v5e
topology: v5e:2x2
jax: 0.10.0
libtpu: 0.0.40
codegen_flags: <defaults>
</compile_context>

<pallas_src>
import jax
import jax.numpy as jnp
from jax.experimental import pallas as pl
from jax.experimental.pallas import tpu as pltpu


def _round_up(x, m):
    return ((x + m - 1) // m) * m


def qe_disc_kernel(q_ref, e_ref, w1q_ref, w1e_ref, b1_ref, w2_ref, b2_ref, o_ref):
    # Cast native-width activation tiles to bf16 in VMEM (no wrapper HBM pass).
    qb = q_ref[...].astype(jnp.bfloat16)
    eb = e_ref[...].astype(jnp.bfloat16)
    # First linear with the concat fused algebraically; f32 accumulation on MXU.
    h = (
        jnp.dot(qb, w1q_ref[...], preferred_element_type=jnp.float32)
        + jnp.dot(eb, w1e_ref[...], preferred_element_type=jnp.float32)
        + b1_ref[...]
    )
    h = jnp.tanh(h)  # EUP; padded mm columns are tanh(0) == 0
    # Second linear (out_features == 1) on the MXU: bf16 inputs, f32 accumulate.
    # Padded rows of w2 are zero so they contribute nothing.
    logits = (
        jnp.dot(h.astype(jnp.bfloat16), w2_ref[...],
                preferred_element_type=jnp.float32)
        + b2_ref[0, 0]
    )
    o_ref[...] = jax.nn.sigmoid(logits).astype(o_ref.dtype)


def prepare_params(w1, b1, w2, b2, q_dim):
    """One-time parameter prep (pad mm_dim to 128 lanes, cast matmul weights to
    bf16, split W1 for the fused concat). Reuse the result across forward calls.

    w1: (q_dim + e_dim, mm_dim)   b1: (mm_dim,)   w2: (mm_dim, 1)   b2: (1,)
    """
    in1, mm_dim = w1.shape
    e_dim = in1 - q_dim
    mm_pad = _round_up(mm_dim, 128)

    w1q = jnp.zeros((q_dim, mm_pad), jnp.bfloat16).at[:, :mm_dim].set(
        w1[:q_dim, :].astype(jnp.bfloat16))
    w1e = jnp.zeros((e_dim, mm_pad), jnp.bfloat16).at[:, :mm_dim].set(
        w1[q_dim:, :].astype(jnp.bfloat16))
    b1p = jnp.zeros((1, mm_pad), jnp.float32).at[0, :mm_dim].set(
        b1.astype(jnp.float32))
    w2c = jnp.zeros((mm_pad, 1), jnp.bfloat16).at[:mm_dim, 0].set(
        w2[:, 0].astype(jnp.bfloat16))
    b2s = b2.reshape(1, 1).astype(jnp.float32)
    return w1q, w1e, b1p, w2c, b2s


def _choose_tb(B, tb):
    """Batch-tile selection (multiple of 16; floor 512 for large B; keep
    >= ~8 grid steps so both v7x TensorCores get a pipelined stream)."""
    if B <= 512:
        return _round_up(B, 8)
    cap = max(512, _round_up(pl.cdiv(B, 8), 16))
    TB = min(_round_up(tb, 16), cap)
    return max(TB, 512)


def qe_discriminator(q, e, params, *, tb=2048):
    """Forward pass. q: (B, q_dim) f32, e: (B, e_dim) f32,
    params: output of prepare_params(). Returns (B, 1) float32."""
    w1q, w1e, b1p, w2c, b2s = params
    B, q_dim = q.shape
    _, e_dim = e.shape
    mm_pad = w1q.shape[1]

    TB = _choose_tb(B, tb)
    grid = (pl.cdiv(B, TB),)

    out = pl.pallas_call(
        qe_disc_kernel,
        out_shape=jax.ShapeDtypeStruct((B, 1), jnp.float32),
        grid=grid,
        in_specs=[
            # Activations at native width/dtype; only the batch axis is tiled.
            pl.BlockSpec((TB, q_dim), lambda i: (i, 0)),
            pl.BlockSpec((TB, e_dim), lambda i: (i, 0)),
            # Weights/biases: constant block index -> VMEM-resident across steps.
            pl.BlockSpec((q_dim, mm_pad), lambda i: (0, 0)),
            pl.BlockSpec((e_dim, mm_pad), lambda i: (0, 0)),
            pl.BlockSpec((1, mm_pad), lambda i: (0, 0)),
            pl.BlockSpec((mm_pad, 1), lambda i: (0, 0)),
            pl.BlockSpec(memory_space=pltpu.MemorySpace.SMEM),  # b2 scalar
        ],
        out_specs=pl.BlockSpec((TB, 1), lambda i: (i, 0)),
        compiler_params=pltpu.CompilerParams(
            dimension_semantics=("parallel",),      # batch axis shards over TCs
            vmem_limit_bytes=32 * 1024 * 1024,      # safe on v5e/v6e/v7x
        ),
    )(q, e, w1q, w1e, b1p, w2c, b2s)
    return out


def init_params(key, q_dim, e_dim, mm_dim):
    """Deterministic init matching nn.Linear (uniform +/- 1/sqrt(fan_in))."""
    k1, k2, k3, k4 = jax.random.split(key, 4)
    in1 = q_dim + e_dim
    bound1 = 1.0 / jnp.sqrt(in1)
    bound2 = 1.0 / jnp.sqrt(mm_dim)
    w1 = jax.random.uniform(k1, (in1, mm_dim), jnp.float32, -bound1, bound1)
    b1 = jax.random.uniform(k2, (mm_dim,), jnp.float32, -bound1, bound1)
    w2 = jax.random.uniform(k3, (mm_dim, 1), jnp.float32, -bound2, bound2)
    b2 = jax.random.uniform(k4, (1,), jnp.float32, -bound2, bound2)
    return w1, b1, w2, b2


def _ref(q, e, w1, b1, w2, b2):
    x = jnp.concatenate([q, e], axis=1)
    return jax.nn.sigmoid(jnp.tanh(x @ w1 + b1) @ w2 + b2)


if __name__ == "__main__":
    key = jax.random.PRNGKey(0)
    kq, ke, kp, kq2, ke2 = jax.random.split(key, 5)

    # Small shapes consistent with the module.
    B, q_dim, e_dim, mm_dim = 8, 16, 16, 32
    q = jax.random.normal(kq, (B, q_dim), jnp.float32)
    e = jax.random.normal(ke, (B, e_dim), jnp.float32)
    w1, b1, w2, b2 = init_params(kp, q_dim, e_dim, mm_dim)

    # One-time parameter prep (hoisted out of the per-call path).
    params = prepare_params(w1, b1, w2, b2, q_dim)

    out = jax.block_until_ready(qe_discriminator(q, e, params))
    ref = _ref(q, e, w1, b1, w2, b2)
    assert out.shape == (B, 1)
    # bf16 matmul inputs with f32 accumulation -> relaxed tolerance vs f32 ref.
    assert jnp.allclose(out, ref, atol=2e-2, rtol=2e-2), float(
        jnp.max(jnp.abs(out - ref)))

    # Second run: larger, non-divisible batch -> multi-step grid with a masked
    # partial last block (no wrapper-side padding).
    B2 = 520
    q2 = jax.random.normal(kq2, (B2, q_dim), jnp.float32)
    e2 = jax.random.normal(ke2, (B2, e_dim), jnp.float32)
    out2 = jax.block_until_ready(qe_discriminator(q2, e2, params))
    ref2 = _ref(q2, e2, w1, b1, w2, b2)
    assert out2.shape == (B2, 1)
    assert jnp.allclose(out2, ref2, atol=2e-2, rtol=2e-2), float(
        jnp.max(jnp.abs(out2 - ref2)))

    print("KERNEL_OK")
</pallas_src>

<mosaic_0001>
module attributes {stable_mosaic.version = 11 : i64} {
  func.func @qe_disc_kernel(%arg0: i32, %arg1: memref<8x16xf32, #tpu.memory_space<vmem>>, %arg2: memref<8x16xf32, #tpu.memory_space<vmem>>, %arg3: memref<16x128xbf16, #tpu.memory_space<vmem>>, %arg4: memref<16x128xbf16, #tpu.memory_space<vmem>>, %arg5: memref<1x128xf32, #tpu.memory_space<vmem>>, %arg6: memref<128x1xbf16, #tpu.memory_space<vmem>>, %arg7: memref<1x1xf32, #tpu.memory_space<smem>>, %arg8: memref<8x1xf32, #tpu.memory_space<vmem>>) attributes {dimension_semantics = [#tpu.dimension_semantics<parallel>], iteration_bounds = array<i64: 1>, scalar_prefetch = 0 : i64, scratch_operands = 0 : i64, tpu.core_type = #tpu.core_type<tc>, window_params = [{transform_indices = @transform_0, window_bounds = array<i64: 8, 16>}, {transform_indices = @transform_1, window_bounds = array<i64: 8, 16>}, {pipeline_mode = #tpu.pipeline_mode<synchronous>, transform_indices = @transform_2, window_bounds = array<i64: 16, 128>}, {pipeline_mode = #tpu.pipeline_mode<synchronous>, transform_indices = @transform_3, window_bounds = array<i64: 16, 128>}, {pipeline_mode = #tpu.pipeline_mode<synchronous>, transform_indices = @transform_4, window_bounds = array<i64: 1, 128>}, {pipeline_mode = #tpu.pipeline_mode<synchronous>, transform_indices = @transform_5, window_bounds = array<i64: 128, 1>}, {transform_indices = @transform_6, window_bounds = array<i64: 1, 1>}, {transform_indices = @transform_7, window_bounds = array<i64: 8, 1>}]} {
    %c0 = arith.constant 0 : index
    %c0_0 = arith.constant 0 : index
    %0 = vector.load %arg1[%c0, %c0_0] : memref<8x16xf32, #tpu.memory_space<vmem>>, vector<8x16xf32>
    %1 = arith.truncf %0 : vector<8x16xf32> to vector<8x16xbf16>
    %c0_1 = arith.constant 0 : index
    %c0_2 = arith.constant 0 : index
    %2 = vector.load %arg2[%c0_1, %c0_2] : memref<8x16xf32, #tpu.memory_space<vmem>>, vector<8x16xf32>
    %3 = arith.truncf %2 : vector<8x16xf32> to vector<8x16xbf16>
    %c0_3 = arith.constant 0 : index
    %c0_4 = arith.constant 0 : index
    %4 = vector.load %arg3[%c0_3, %c0_4] : memref<16x128xbf16, #tpu.memory_space<vmem>>, vector<16x128xbf16>
    %cst = arith.constant dense<0.000000e+00> : vector<8x128xf32>
    %5 = tpu.matmul %1, %4, %cst {dimension_numbers = #tpu.dot_dimension_numbers<[1], [0], [0], [1], [0, 0, 1, 1], [], []>} : vector<8x16xbf16>, vector<16x128xbf16>, vector<8x128xf32> -> vector<8x128xf32>
    %c0_5 = arith.constant 0 : index
    %c0_6 = arith.constant 0 : index
    %6 = vector.load %arg4[%c0_5, %c0_6] : memref<16x128xbf16, #tpu.memory_space<vmem>>, vector<16x128xbf16>
    %cst_7 = arith.constant dense<0.000000e+00> : vector<8x128xf32>
    %7 = tpu.matmul %3, %6, %cst_7 {dimension_numbers = #tpu.dot_dimension_numbers<[1], [0], [0], [1], [0, 0, 1, 1], [], []>} : vector<8x16xbf16>, vector<16x128xbf16>, vector<8x128xf32> -> vector<8x128xf32>
    %8 = arith.addf %5, %7 : vector<8x128xf32>
    %c0_8 = arith.constant 0 : index
    %c0_9 = arith.constant 0 : index
    %9 = vector.load %arg5[%c0_8, %c0_9] : memref<1x128xf32, #tpu.memory_space<vmem>>, vector<1x128xf32>
    %10 = vector.broadcast %9 : vector<1x128xf32> to vector<8x128xf32>
    %11 = arith.addf %8, %10 : vector<8x128xf32>
    %12 = math.tanh %11 : vector<8x128xf32>
    %13 = arith.truncf %12 : vector<8x128xf32> to vector<8x128xbf16>
    %c0_10 = arith.constant 0 : index
    %c0_11 = arith.constant 0 : index
    %14 = vector.load %arg6[%c0_10, %c0_11] : memref<128x1xbf16, #tpu.memory_space<vmem>>, vector<128x1xbf16>
    %cst_12 = arith.constant dense<0.000000e+00> : vector<8x1xf32>
    %15 = tpu.matmul %13, %14, %cst_12 {dimension_numbers = #tpu.dot_dimension_numbers<[1], [0], [0], [1], [0, 0, 1, 1], [], []>} : vector<8x128xbf16>, vector<128x1xbf16>, vector<8x1xf32> -> vector<8x1xf32>
    %c0_13 = arith.constant 0 : index
    %c0_14 = arith.constant 0 : index
    %16 = memref.load %arg7[%c0_13, %c0_14] : memref<1x1xf32, #tpu.memory_space<smem>>
    %17 = vector.broadcast %16 : f32 to vector<8x1xf32>
    %18 = arith.addf %15, %17 : vector<8x1xf32>
    %19 = arith.negf %18 : vector<8x1xf32>
    %20 = math.exp %19 : vector<8x1xf32>
    %cst_15 = arith.constant 1.000000e+00 : f32
    %21 = vector.broadcast %cst_15 : f32 to vector<8x1xf32>
    %22 = arith.addf %21, %20 : vector<8x1xf32>
    %23 = arith.divf %21, %22 : vector<8x1xf32>
    %c0_16 = arith.constant 0 : index
    %c0_17 = arith.constant 0 : index
    %24 = vector.load %arg8[%c0_16, %c0_17] : memref<8x1xf32, #tpu.memory_space<vmem>>, vector<8x1xf32>
    tpu.vector_store %arg8[%c0_16, %c0_17], %23 {strides = array<i32>} : memref<8x1xf32, #tpu.memory_space<vmem>>, vector<8x1xf32>,
    return
  }
  func.func @transform_0(%arg0: i32) -> (i32, i32) {
    %c0_i32 = arith.constant 0 : i32
    %c0_i32_0 = arith.constant 0 : i32
    return %arg0, %c0_i32 : i32, i32
  }
  func.func @transform_1(%arg0: i32) -> (i32, i32) {
    %c0_i32 = arith.constant 0 : i32
    %c0_i32_0 = arith.constant 0 : i32
    return %arg0, %c0_i32 : i32, i32
  }
  func.func @transform_2(%arg0: i32) -> (i32, i32) {
    %c0_i32 = arith.constant 0 : i32
    %c0_i32_0 = arith.constant 0 : i32
    %c0_i32_1 = arith.constant 0 : i32
    return %c0_i32, %c0_i32_0 : i32, i32
  }
  func.func @transform_3(%arg0: i32) -> (i32, i32) {
    %c0_i32 = arith.constant 0 : i32
    %c0_i32_0 = arith.constant 0 : i32
    %c0_i32_1 = arith.constant 0 : i32
    return %c0_i32, %c0_i32_0 : i32, i32
  }
  func.func @transform_4(%arg0: i32) -> (i32, i32) {
    %c0_i32 = arith.constant 0 : i32
    %c0_i32_0 = arith.constant 0 : i32
    %c0_i32_1 = arith.constant 0 : i32
    return %c0_i32, %c0_i32_0 : i32, i32
  }
  func.func @transform_5(%arg0: i32) -> (i32, i32) {
    %c0_i32 = arith.constant 0 : i32
    %c0_i32_0 = arith.constant 0 : i32
    %c0_i32_1 = arith.constant 0 : i32
    return %c0_i32, %c0_i32_0 : i32, i32
  }
  func.func @transform_6(%arg0: i32) -> (i32, i32) {
    %c0_i32 = arith.constant 0 : i32
    %c0_i32_0 = arith.constant 0 : i32
    %c0_i32_1 = arith.constant 0 : i32
    return %c0_i32, %c0_i32_0 : i32, i32
  }
  func.func @transform_7(%arg0: i32) -> (i32, i32) {
    %c0_i32 = arith.constant 0 : i32
    %c0_i32_0 = arith.constant 0 : i32
    return %arg0, %c0_i32 : i32, i32
  }
}

</mosaic_0001>

<llo_original>
// kernel: tpu_custom_call.1
$region0: #{tpu_custom_call.1}
  #allocation0 [shape = 'u32[]', space=smem, size = 0x4, offset = 0x4, fixed_abs, tag = 'smem constant byte address 0x4 - core index']
  #allocation1 [shape = 'u32[72,128]{1,0:T(1,128)}', space=vmem, size = 0x9000, scoped, tag = 'internal scratch']
  #allocation2 [shape = 'f32[1,1]{1,0:T(1,128)S(6)}', space=smem, size = 0x200, scoped, tag = 'scoped memory for tpu_custom_call.1']
  %s0 = inlined_call_operand.vmem [shape: f32[8,16], index: 0, kind: input, shape index: {}]
  %s1 = inlined_call_operand.vmem [shape: f32[8,16], index: 1, kind: input, shape index: {}]
  %s2 = inlined_call_operand.vmem [shape: bf16[16,128], index: 2, kind: input, shape index: {}]
  %s3 = inlined_call_operand.vmem [shape: bf16[16,128], index: 3, kind: input, shape index: {}]
  %s4 = inlined_call_operand.vmem [shape: f32[1,128], index: 4, kind: input, shape index: {}]
  %s5 = inlined_call_operand.vmem [shape: bf16[128,1], index: 5, kind: input, shape index: {}]
  %s6 = inlined_call_operand.<no memory space> [shape: f32[1,1], index: 6, kind: input, shape index: {}]
  %s7 = inlined_call_operand.vmem [shape: f32[8,1], index: 7, kind: output, shape index: {}]
  %s8 = sld [smem:[#allocation0]]
  $region38: #{tpu_custom_call.1} parent=0
    _
  %s10 = ssub.s32 1, %s8
  %s11 = scalar_select 0, %s10, %s8
  %12 = sst [smem:[#allocation2]] %s6
  // Predicated region
  $region2: #{tpu_custom_call.1} parent=0 // pred_check
    _
  $region3: #{tpu_custom_call.1} parent=0 // pred_check_branch
    %14 = sbr.rel (0) target = $region5
  $region4: #{tpu_custom_call.1} parent=0 // pred_region
    _
  $region5: #{tpu_custom_call.1} parent=0 // pred_fallthru
    _
  // Predicated region
  $region6: #{tpu_custom_call.1} parent=0 // pred_check
    _
  $region7: #{tpu_custom_call.1} parent=0 // pred_check_branch
    %16 = sbr.rel (0) target = $region9
  $region8: #{tpu_custom_call.1} parent=0 // pred_region
    _
  $region9: #{tpu_custom_call.1} parent=0 // pred_fallthru
    _
  // Predicated region
  $region10: #{tpu_custom_call.1} parent=0 // pred_check
    _
  $region11: #{tpu_custom_call.1} parent=0 // pred_check_branch
    %18 = sbr.rel (0) target = $region13
  $region12: #{tpu_custom_call.1} parent=0 // pred_region
    _
  $region13: #{tpu_custom_call.1} parent=0 // pred_fallthru
    _
  // Predicated region
  $region14: #{tpu_custom_call.1} parent=0 // pred_check
    _
  $region15: #{tpu_custom_call.1} parent=0 // pred_check_branch
    %20 = sbr.rel (0) target = $region17
  $region16: #{tpu_custom_call.1} parent=0 // pred_region
    _
  $region17: #{tpu_custom_call.1} parent=0 // pred_fallthru
    _
  // Predicated region
  $region18: #{tpu_custom_call.1} parent=0 // pred_check
    _
  $region19: #{tpu_custom_call.1} parent=0 // pred_check_branch
    %22 = sbr.rel (0) target = $region21
  $region20: #{tpu_custom_call.1} parent=0 // pred_region
    _
  $region21: #{tpu_custom_call.1} parent=0 // pred_fallthru
    _
  // Predicated region
  $region22: #{tpu_custom_call.1} parent=0 // pred_check
    _
  $region23: #{tpu_custom_call.1} parent=0 // pred_check_branch
    %24 = sbr.rel (0) target = $region25
  $region24: #{tpu_custom_call.1} parent=0 // pred_region
    _
  $region25: #{tpu_custom_call.1} parent=0 // pred_fallthru
    _
  // Predicated region
  $region26: #{tpu_custom_call.1} parent=0 // pred_check
    _
  $region27: #{tpu_custom_call.1} parent=0 // pred_check_branch
    %26 = sbr.rel (0) target = $region29
  $region28: #{tpu_custom_call.1} parent=0 // pred_region
    _
  $region29: #{tpu_custom_call.1} parent=0 // pred_fallthru
    _
  %v28 = vld [vmem:[%s0] sm:$0xff]
  %v29 = vpack.c.bf16 %v28, %v28
  %v30 = vld [vmem:[%s1] sm:$0xff]
  %v31 = vpack.c.bf16 %v30, %v30
  %v32 = vld [vmem:[%s2] sm:$0xf]
  %v33 = vld [vmem:[%s2 + $0x4] sm:$0xf]
  %v34 = vld [vmem:[%s3] sm:$0xf]
  %v35 = vld [vmem:[%s3 + $0x4] sm:$0xf]
  %v38 = vunpack.c.l.b16 %v34
  %v39 = vunpack.c.l.b16 %v35
  %v40 = vpack.c.b16 %v39, %v38
  %vm42 = vcmask 130048
  %v44 = vsel %vm42, %v31, 0
  %46 = vmatpush.bf16.msra.mxu0 0
  %47 = vmatpush.bf16.msra.mxu0 0
  %48 = vmatpush.bf16.msra.mxu0 0
  %49 = vmatpush.bf16.msra.mxu0 0
  %50 = vmatpush.bf16.msra.mxu0 0
  %51 = vmatpush.bf16.msra.mxu0 0
  %52 = vmatpush.bf16.msra.mxu0 0
  %53 = vmatpush.bf16.msra.mxu0 %v40
  %54 = vmatmul.bf16.gmra.mxu0 %v44
  %v55 = vpop.f32.mrf.mxu0
  %v56 = vadd.f32 0.0, %v55
  %v57 = vpop.f32.mrf.mxu0
  %58 = vdwg.mxu0
  %v61 = vunpack.c.l.b16 %v32
  %v62 = vunpack.c.l.b16 %v33
  %v63 = vpack.c.b16 %v62, %v61
  %v66 = vsel %vm42, %v29, 0
  %68 = vmatpush.bf16.msra.mxu0 0
  %69 = vmatpush.bf16.msra.mxu0 0
  %70 = vmatpush.bf16.msra.mxu0 0
  %71 = vmatpush.bf16.msra.mxu0 0
  %72 = vmatpush.bf16.msra.mxu0 0
  %73 = vmatpush.bf16.msra.mxu0 0
  %74 = vmatpush.bf16.msra.mxu0 0
  %75 = vmatpush.bf16.msra.mxu0 %v63
  %76 = vmatmul.bf16.gmra.mxu0 %v66
  %v77 = vpop.f32.mrf.mxu0
  %v78 = vadd.f32 %v56, %v77
  %v79 = vpop.f32.mrf.mxu0
  %80 = vdwg.mxu0
  %v81 = vld [vmem:[%s4] sm:$0x1]
  %v83 = vperm.slane %v81, 0
  %v85 = vadd.f32 %v78, %v83
  %v86 = vtanh.pop %v85
  %v87 = vpack.c.bf16 %v86, %v86
  %v88 = vld [vmem:[%s5] sm:$0xf]
  %v89 = vld [vmem:[%s5 + $0x4] sm:$0xf]
  %v90 = vld [vmem:[%s5 + $0x8] sm:$0xf]
  %v91 = vld [vmem:[%s5 + $0xc] sm:$0xf]
  %v92 = vld [vmem:[%s5 + $0x10] sm:$0xf]
  %v93 = vld [vmem:[%s5 + $0x14] sm:$0xf]
  %v94 = vld [vmem:[%s5 + $0x18] sm:$0xf]
  %v95 = vld [vmem:[%s5 + $0x1c] sm:$0xf]
  %v96 = vld [vmem:[%s5 + $0x20] sm:$0xf]
  %v97 = vld [vmem:[%s5 + $0x24] sm:$0xf]
  %v98 = vld [vmem:[%s5 + $0x28] sm:$0xf]
  %v99 = vld [vmem:[%s5 + $0x2c] sm:$0xf]
  %v100 = vld [vmem:[%s5 + $0x30] sm:$0xf]
  %v101 = vld [vmem:[%s5 + $0x34] sm:$0xf]
  %v102 = vld [vmem:[%s5 + $0x38] sm:$0xf]
  %v103 = vld [vmem:[%s5 + $0x3c] sm:$0xf]
  %s104 = sld [smem:[#allocation2]]
  %v105 = vstv %s104
  %v122 = vunpack.c.l.b16 %v88
  %v123 = vunpack.c.l.b16 %v89
  %v124 = vunpack.c.l.b16 %v90
  %v125 = vunpack.c.l.b16 %v91
  %v126 = vunpack.c.l.b16 %v92
  %v127 = vunpack.c.l.b16 %v93
  %v128 = vunpack.c.l.b16 %v94
  %v129 = vunpack.c.l.b16 %v95
  %v130 = vunpack.c.l.b16 %v96
  %v131 = vunpack.c.l.b16 %v97
  %v132 = vunpack.c.l.b16 %v98
  %v133 = vunpack.c.l.b16 %v99
  %v134 = vunpack.c.l.b16 %v100
  %v135 = vunpack.c.l.b16 %v101
  %v136 = vunpack.c.l.b16 %v102
  %v137 = vunpack.c.l.b16 %v103
  %v138 = vpack.c.b16 %v123, %v122
  %v139 = vpack.c.b16 %v125, %v124
  %v140 = vpack.c.b16 %v127, %v126
  %v141 = vpack.c.b16 %v129, %v128
  %v142 = vpack.c.b16 %v131, %v130
  %v143 = vpack.c.b16 %v133, %v132
  %v144 = vpack.c.b16 %v135, %v134
  %v145 = vpack.c.b16 %v137, %v136
  %154 = vmatpush.bf16.msra.mxu0 %v145
  %155 = vmatpush.bf16.msra.mxu0 %v144
  %156 = vmatpush.bf16.msra.mxu0 %v143
  %157 = vmatpush.bf16.msra.mxu0 %v142
  %158 = vmatpush.bf16.msra.mxu0 %v141
  %159 = vmatpush.bf16.msra.mxu0 %v140
  %160 = vmatpush.bf16.msra.mxu0 %v139
  %161 = vmatpush.bf16.msra.mxu0 %v138
  %162 = vmatmul.bf16.gmra.mxu0 %v87
  %v163 = vpop.f32.mrf.mxu0
  %v164 = vadd.f32 %v105, %v163
  %v165 = vpop.f32.mrf.mxu0
  %166 = vdwg.mxu0
  %v167 = vxor.u32 %v164, 2147483648
  %v168 = vmul.f32 %v167, 1.442695
  %v169 = vpow.pop %v168
  %v170 = vadd.f32 %v169, 1.0
  %v171 = vrcp.pop %v170
  %v172 = vmul.f32 %v170, %v171
  %v173 = vsub.f32 1.0, %v172
  %v174 = vmul.f32 %v171, %v173
  %v175 = vadd.f32 %v171, %v174
  %vm176 = vweird.f32 %v170
  %vm177 = vweird.f32 %v171
  %vm178 = vmor %vm176, %vm177
  %v179 = vsel %vm178, %v171, %v175
  %v180 = vand.u32 2147483647, %v170
  %vm181 = vcmp.eq.f32.partialorder %v180, 8.507059e+37
  %v182 = vand.u32 %v170, 2147483648
  %v183 = vor.u32 1.1754944e-38, %v182
  %v184 = vsel %vm181, %v183, %v179
  %v185 = vmul.f32 1.0, %v184
  %vm186 = vcmask 7168
  %187 = vst.msk [vmem:[%s7] sm:$0xff] %vm186, %v185
  // Predicated region
  $region30: #{tpu_custom_call.1} parent=0 // pred_check
    _
  $region31: #{tpu_custom_call.1} parent=0 // pred_check_branch
    %189 = sbr.rel (0) target = $region33
  $region32: #{tpu_custom_call.1} parent=0 // pred_region
    _
  $region33: #{tpu_custom_call.1} parent=0 // pred_fallthru
    _
  // Predicated region
  $region34: #{tpu_custom_call.1} parent=0 // pred_check
    _
  $region35: #{tpu_custom_call.1} parent=0 // pred_check_branch
    %191 = sbr.rel (0) target = $region37
  $region36: #{tpu_custom_call.1} parent=0 // pred_region
    _
  $region37: #{tpu_custom_call.1} parent=0 // pred_fallthru
    _

</llo_original>
